<compile_context>
chip_gen: v5e
topology: v5e:2x2
jax: 0.10.0
libtpu: 0.0.40
codegen_flags: <defaults>
</compile_context>

<pallas_src>
import numpy as np

import jax
import jax.numpy as jnp
from jax.experimental import pallas as pl
from jax.experimental.pallas import tpu as pltpu


# ----------------------------------------------------------------------------
# Host-side parameter setup (faithful numpy port of Resizer.__init__ helpers)
# ----------------------------------------------------------------------------
def cubic(x):
    absx = np.abs(x)
    absx2 = absx ** 2
    absx3 = absx ** 3
    return ((1.5 * absx3 - 2.5 * absx2 + 1) * (absx <= 1)
            + (-0.5 * absx3 + 2.5 * absx2 - 4 * absx + 2)
            * ((1 < absx) & (absx <= 2)))


def fix_scale_and_size(input_shape, output_shape, scale_factor):
    if scale_factor is not None:
        if np.isscalar(scale_factor) and len(input_shape) > 1:
            scale_factor = [scale_factor, scale_factor]
        scale_factor = list(scale_factor)
        scale_factor = [1] * (len(input_shape) - len(scale_factor)) + scale_factor
    if output_shape is not None:
        output_shape = list(input_shape[len(output_shape):]) + list(
            np.uint(np.array(output_shape)))
    if scale_factor is None:
        scale_factor = 1.0 * np.array(output_shape) / np.array(input_shape)
    if output_shape is None:
        output_shape = np.uint(np.ceil(np.array(input_shape) * np.array(scale_factor)))
    return scale_factor, output_shape


def contributions(in_length, out_length, scale, kernel, kernel_width, antialiasing):
    fixed_kernel = (lambda arg: scale * kernel(scale * arg)) if antialiasing else kernel
    kernel_width *= 1.0 / scale if antialiasing else 1.0
    out_coordinates = np.arange(1, out_length + 1)
    shifted_out_coordinates = out_coordinates - (out_length - in_length * scale) / 2
    match_coordinates = shifted_out_coordinates / scale + 0.5 * (1 - 1 / scale)
    left_boundary = np.floor(match_coordinates - kernel_width / 2)
    expanded_kernel_width = np.ceil(kernel_width) + 2
    field_of_view = np.squeeze(
        np.int16(np.expand_dims(left_boundary, axis=1)
                 + np.arange(expanded_kernel_width) - 1))
    weights = fixed_kernel(1.0 * np.expand_dims(match_coordinates, axis=1)
                           - field_of_view - 1)
    sum_weights = np.sum(weights, axis=1)
    sum_weights[sum_weights == 0] = 1.0
    weights = 1.0 * weights / np.expand_dims(sum_weights, axis=1)
    mirror = np.uint(np.concatenate((np.arange(in_length),
                                     np.arange(in_length - 1, -1, step=-1))))
    field_of_view = mirror[np.mod(field_of_view, mirror.shape[0])]
    non_zero_out_pixels = np.nonzero(np.any(weights, axis=0))
    weights = np.squeeze(weights[:, non_zero_out_pixels])
    field_of_view = np.squeeze(field_of_view[:, non_zero_out_pixels])
    return weights, field_of_view


def build_resizer_params(in_shape, scale_factor=None, output_shape=None,
                         antialiasing=True):
    """Reproduces Resizer.__init__ (kernel=None -> cubic).

    Returns:
      sorted_dims : resize-dim order chosen by argsort (resize is separable,
                    so any tie order gives the same result up to rounding).
      fovs, ws    : gather indices / weights per dim (for the reference impl).
      dense_by_dim: {dim: (in_len, out_len) dense resize matrix}.
      out_shape   : output tensor shape (tuple of int).
    """
    scale_factor, output_shape = fix_scale_and_size(in_shape, output_shape, scale_factor)
    method, kernel_width = cubic, 4.0
    antialiasing = bool(antialiasing) and bool(np.any(np.array(scale_factor) < 1))
    sorted_dims = np.argsort(np.array(scale_factor))
    sorted_dims = [int(d) for d in sorted_dims if scale_factor[d] != 1]

    fovs, ws, dense_by_dim = [], [], {}
    for dim in sorted_dims:
        in_len, out_len = in_shape[dim], int(output_shape[dim])
        weights, field_of_view = contributions(
            in_len, out_len, scale_factor[dim], method, kernel_width, antialiasing)
        w_t = weights.T.astype(np.float32)                 # (P, out_len)
        fov_t = field_of_view.T.astype(np.int64)           # (P, out_len)
        ws.append(w_t)
        fovs.append(fov_t)
        # gather + weighted sum over P  ==  dense matmul with scatter-added matrix
        M = np.zeros((in_len, out_len), dtype=np.float32)
        cols = np.broadcast_to(np.arange(out_len), fov_t.shape)
        np.add.at(M, (fov_t, cols), w_t)
        dense_by_dim[dim] = M
    return sorted_dims, fovs, ws, dense_by_dim, tuple(int(s) for s in output_shape)


# ----------------------------------------------------------------------------
# Pallas kernels: row-batched (B, K) @ (K, N) matmul with f32 accumulation.
# ----------------------------------------------------------------------------
def _matmul_rows_kernel(x_ref, m_ref, o_ref):
    # Single K step: whole resize matrix is resident in VMEM.
    o_ref[...] = jnp.dot(x_ref[...], m_ref[...],
                         preferred_element_type=jnp.float32).astype(o_ref.dtype)


def _matmul_rows_ktiled_kernel(x_ref, m_ref, o_ref, acc_ref):
    # K-tiled variant with an accumulator (init / finalize via pl.when).
    @pl.when(pl.program_id(1) == 0)
    def _():
        acc_ref[...] = jnp.zeros_like(acc_ref)

    acc_ref[...] += jnp.dot(x_ref[...], m_ref[...],
                            preferred_element_type=jnp.float32)

    @pl.when(pl.program_id(1) == pl.num_programs(1) - 1)
    def _():
        o_ref[...] = acc_ref[...].astype(o_ref.dtype)


def _round_up(x, m):
    return ((x + m - 1) // m) * m


_VMEM_BUDGET = 8 << 20        # conservative working-set budget (safe on v7x 64 MiB)
_K_TILE = 512                 # K tile for the accumulator path (multiple of 128)


def _pick_row_tile(n_rows, k, n, dtype_bytes, vmem_budget=_VMEM_BUDGET, max_rows=1024):
    """Rows per grid step: as many as fit a double-buffered VMEM budget,
    multiple of 8, capped so big problems still produce multiple grid steps."""
    fixed = 2 * k * n * dtype_bytes                 # resize matrix (double-buffered)
    per_row = 2 * (k + n) * dtype_bytes             # in + out block rows, x2 buffers
    b = max(8, (vmem_budget - fixed) // max(per_row, 1))
    b = min(b, max_rows, _round_up(n_rows, 8))
    return max(8, (b // 8) * 8)


def _matmul_rows(x2d, m, *, use_bf16=False, out_dtype=jnp.float32):
    """(R, K) @ (K, N) with the row axis tiled over a parallel grid.

    The output lane axis N is zero-padded (via the matrix) to a multiple of
    128 so stores are unmasked; the pad is sliced off afterwards.
    """
    R, K = x2d.shape
    K2, N = m.shape
    assert K == K2, (K, K2)
    in_dt = jnp.bfloat16 if use_bf16 else jnp.float32
    dtype_bytes = 2 if use_bf16 else 4
    x2d = x2d.astype(in_dt)
    m = m.astype(in_dt)

    # Lane-dense output: pad N up to a multiple of 128 with zero columns.
    Np = _round_up(N, 128)
    if Np != N:
        m = jnp.pad(m, ((0, 0), (0, Np - N)))

    # Decide whether the whole (K, Np) matrix comfortably fits in VMEM.
    matrix_bytes = 2 * K * Np * dtype_bytes
    k_tiled = matrix_bytes > _VMEM_BUDGET // 2

    Kp = K
    if k_tiled:
        Kp = _round_up(K, _K_TILE)
        if Kp != K:
            # Zero-pad the contraction axis (mathematically a no-op).
            x2d = jnp.pad(x2d, ((0, 0), (0, Kp - K)))
            m = jnp.pad(m, ((0, Kp - K), (0, 0)))
        eff_k = _K_TILE
    else:
        eff_k = K

    B = _pick_row_tile(R, eff_k, Np, dtype_bytes)
    Rp = _round_up(R, B)
    if Rp != R:
        x2d = jnp.pad(x2d, ((0, Rp - R), (0, 0)))

    if not k_tiled:
        out = pl.pallas_call(
            _matmul_rows_kernel,
            out_shape=jax.ShapeDtypeStruct((Rp, Np), out_dtype),
            grid=(Rp // B,),
            in_specs=[
                pl.BlockSpec((B, K), lambda i: (i, 0)),        # batched image rows
                pl.BlockSpec((K, Np), lambda i: (0, 0)),       # shared resize matrix
            ],
            out_specs=pl.BlockSpec((B, Np), lambda i: (i, 0)),
            compiler_params=pltpu.CompilerParams(
                dimension_semantics=("parallel",)),
        )(x2d, m)
    else:
        out = pl.pallas_call(
            _matmul_rows_ktiled_kernel,
            out_shape=jax.ShapeDtypeStruct((Rp, Np), out_dtype),
            grid=(Rp // B, Kp // _K_TILE),
            in_specs=[
                pl.BlockSpec((B, _K_TILE), lambda i, k: (i, k)),
                pl.BlockSpec((_K_TILE, Np), lambda i, k: (k, 0)),
            ],
            out_specs=pl.BlockSpec((B, Np), lambda i, k: (i, 0)),
            scratch_shapes=[pltpu.VMEM((B, Np), jnp.float32)],
            compiler_params=pltpu.CompilerParams(
                dimension_semantics=("parallel", "arbitrary")),
        )(x2d, m)

    if Rp != R or Np != N:
        out = out[:R, :N]
    return out


# ----------------------------------------------------------------------------
# Resizer forward (NCHW), matching the PyTorch module semantics.
# ----------------------------------------------------------------------------
_KRON_BUDGET_BYTES = 4 << 20   # use the single-matmul Kronecker path below this


def resizer_forward(x, dense_by_dim, *, use_bf16=False, force_path=None):
    """x: (N, C, Hi, Wi) float32.  dense_by_dim: {2: (Hi,Ho), 3: (Wi,Wo)}."""
    if any(d not in (2, 3) for d in dense_by_dim):
        # TODO(synk): resizing along batch/channel dims is not implemented in
        # the Pallas path (the DDIM use-case only resizes spatial dims).
        raise NotImplementedError("only spatial (H, W) resizing is supported")

    N, C, Hi, Wi = x.shape
    M_h = dense_by_dim.get(2, np.eye(Hi, dtype=np.float32))   # (Hi, Ho)
    M_w = dense_by_dim.get(3, np.eye(Wi, dtype=np.float32))   # (Wi, Wo)
    Ho, Wo = M_h.shape[1], M_w.shape[1]
    NC = N * C

    kron_bytes = Hi * Wi * Ho * Wo * 4
    path = force_path or ("kron" if kron_bytes <= _KRON_BUDGET_BYTES else "separable")

    if path == "kron":
        # One lane-dense matmul: (NC, Hi*Wi) @ kron(M_h, M_w) -> (NC, Ho*Wo).
        M = jnp.asarray(np.kron(M_h, M_w), dtype=jnp.float32)      # (Hi*Wi, Ho*Wo)
        y2 = _matmul_rows(x.reshape(NC, Hi * Wi), M, use_bf16=use_bf16)
        return y2.reshape(N, C, Ho, Wo)

    # Separable path for large images: W-resize then H-resize, each as a
    # row-batched matmul; transposes are wrapper-side layout plumbing.
    mw = jnp.asarray(M_w, dtype=jnp.float32)                       # (Wi, Wo)
    mh = jnp.asarray(M_h, dtype=jnp.float32)                       # (Hi, Ho)
    t = _matmul_rows(x.reshape(NC * Hi, Wi), mw, use_bf16=use_bf16)        # (NC*Hi, Wo)
    t = jnp.swapaxes(t.reshape(NC, Hi, Wo), 1, 2).reshape(NC * Wo, Hi)     # (NC*Wo, Hi)
    y = _matmul_rows(t, mh, use_bf16=use_bf16)                             # (NC*Wo, Ho)
    y = jnp.swapaxes(y.reshape(NC, Wo, Ho), 1, 2)                          # (NC, Ho, Wo)
    return y.reshape(N, C, Ho, Wo)


# ----------------------------------------------------------------------------
# Pure numpy reference of the PyTorch forward() (gather + weighted sum)
# ----------------------------------------------------------------------------
def ref_forward(x_np, sorted_dims, fovs, ws):
    x = x_np
    for dim, fov, w in zip(sorted_dims, fovs, ws):
        x = np.swapaxes(x, dim, 0)
        gathered = x[fov]                                   # (P, out, rest...)
        w_r = w.reshape(w.shape + (1,) * (x.ndim - 1))      # (P, out, 1, 1, 1)
        x = np.sum(gathered * w_r, axis=0)
        x = np.swapaxes(x, dim, 0)
    return x


if __name__ == "__main__":
    N, C, H, W = 2, 4, 16, 16
    in_shape = (N, C, H, W)
    scale = 0.5  # downscale -> antialiased cubic on both spatial dims

    sorted_dims, fovs, ws, dense_by_dim, out_shape = build_resizer_params(
        in_shape, scale_factor=scale, antialiasing=True)
    # argsort tie-order may give [2,3] or [3,2]; both spatial dims must be present.
    assert sorted(sorted_dims) == [2, 3], sorted_dims

    key = jax.random.PRNGKey(0)
    x = jax.random.normal(key, in_shape, dtype=jnp.float32)

    # Main (Kronecker single-matmul) path.
    y_kron = jax.block_until_ready(resizer_forward(x, dense_by_dim, force_path="kron"))
    # Separable two-matmul fallback path (exercised for coverage).
    y_sep = jax.block_until_ready(
        resizer_forward(x, dense_by_dim, force_path="separable"))

    y_ref = ref_forward(np.asarray(x, dtype=np.float64), sorted_dims, fovs, ws)
    assert y_kron.shape == out_shape == y_ref.shape, (y_kron.shape, out_shape, y_ref.shape)
    assert y_sep.shape == out_shape
    np.testing.assert_allclose(np.asarray(y_kron), y_ref, rtol=1e-4, atol=1e-5)
    np.testing.assert_allclose(np.asarray(y_sep), y_ref, rtol=1e-4, atol=1e-5)

    print("KERNEL_OK")
</pallas_src>

<mosaic_0001>
module attributes {stable_mosaic.version = 11 : i64} {
  func.func @_matmul_rows_kernel(%arg0: i32, %arg1: memref<8x256xf32, #tpu.memory_space<vmem>>, %arg2: memref<256x128xf32, #tpu.memory_space<vmem>>, %arg3: memref<8x128xf32, #tpu.memory_space<vmem>>) attributes {dimension_semantics = [#tpu.dimension_semantics<parallel>], iteration_bounds = array<i64: 1>, scalar_prefetch = 0 : i64, scratch_operands = 0 : i64, tpu.core_type = #tpu.core_type<tc>, window_params = [{transform_indices = @transform_0, window_bounds = array<i64: 8, 256>}, {pipeline_mode = #tpu.pipeline_mode<synchronous>, transform_indices = @transform_1, window_bounds = array<i64: 256, 128>}, {transform_indices = @transform_2, window_bounds = array<i64: 8, 128>}]} {
    %c0 = arith.constant 0 : index
    %c0_0 = arith.constant 0 : index
    %0 = vector.load %arg1[%c0, %c0_0] : memref<8x256xf32, #tpu.memory_space<vmem>>, vector<8x256xf32>
    %c0_1 = arith.constant 0 : index
    %c0_2 = arith.constant 0 : index
    %1 = vector.load %arg2[%c0_1, %c0_2] : memref<256x128xf32, #tpu.memory_space<vmem>>, vector<256x128xf32>
    %cst = arith.constant dense<0.000000e+00> : vector<8x128xf32>
    %2 = tpu.matmul %0, %1, %cst {dimension_numbers = #tpu.dot_dimension_numbers<[1], [0], [0], [1], [0, 0, 1, 1], [], []>} : vector<8x256xf32>, vector<256x128xf32>, vector<8x128xf32> -> vector<8x128xf32>
    %c0_3 = arith.constant 0 : index
    %c0_4 = arith.constant 0 : index
    %3 = vector.load %arg3[%c0_3, %c0_4] : memref<8x128xf32, #tpu.memory_space<vmem>>, vector<8x128xf32>
    tpu.vector_store %arg3[%c0_3, %c0_4], %2 {strides = array<i32>} : memref<8x128xf32, #tpu.memory_space<vmem>>, vector<8x128xf32>,
    return
  }
  func.func @transform_0(%arg0: i32) -> (i32, i32) {
    %c0_i32 = arith.constant 0 : i32
    %c0_i32_0 = arith.constant 0 : i32
    return %arg0, %c0_i32 : i32, i32
  }
  func.func @transform_1(%arg0: i32) -> (i32, i32) {
    %c0_i32 = arith.constant 0 : i32
    %c0_i32_0 = arith.constant 0 : i32
    %c0_i32_1 = arith.constant 0 : i32
    return %c0_i32, %c0_i32_0 : i32, i32
  }
  func.func @transform_2(%arg0: i32) -> (i32, i32) {
    %c0_i32 = arith.constant 0 : i32
    %c0_i32_0 = arith.constant 0 : i32
    return %arg0, %c0_i32 : i32, i32
  }
}

</mosaic_0001>

<llo_original>
// kernel: tpu_custom_call.1
$region0: #{tpu_custom_call.1}
  #allocation0 [shape = 'u32[]', space=smem, size = 0x4, offset = 0x4, fixed_abs, tag = 'smem constant byte address 0x4 - core index']
  #allocation1 [shape = 'u32[72,128]{1,0:T(1,128)}', space=vmem, size = 0x9000, scoped, tag = 'internal scratch']
  %s0 = inlined_call_operand.hbm [shape: f32[8,256], index: 0, kind: input, shape index: {}]
  %s1 = inlined_call_operand.hbm [shape: f32[256,128], index: 1, kind: input, shape index: {}]
  %s2 = inlined_call_operand.hbm [shape: f32[8,128], index: 2, kind: output, shape index: {}]
  %s3 = sld [smem:[#allocation0]]
  $region26: #{tpu_custom_call.1} parent=0
    _
  %s5 = ssub.s32 1, %s3
  %s6 = scalar_select 0, %s5, %s3
  $region1: #{tpu_custom_call.1} parent=0
    #allocation2 [shape = 'u8[8192]{0}', space=vmem, size = 0x2000, scoped, tag = 'input window, operand 0, single buffered']
    #allocation3 [shape = 's32[1]{0}', space=sflag, size = 0x4, scoped, tag = 'scoped memory for tpu_custom_call.1']
    #allocation4 [shape = 's32[1]{0}', space=sflag, size = 0x4, scoped, tag = 'scoped memory for tpu_custom_call.1']
    #allocation5 [shape = 'u8[131072]{0}', space=vmem, size = 0x20000, scoped, tag = 'input window, operand 1, single buffered']
    #allocation6 [shape = 's32[1]{0}', space=sflag, size = 0x4, scoped, tag = 'scoped memory for tpu_custom_call.1']
    #allocation7 [shape = 'u8[4096]{0}', space=vmem, size = 0x1000, scoped, tag = 'output window, operand 0, single buffered']
    %7 = vsyncpa [#allocation3], 0
    %8 = vsyncpa [#allocation6], 0
    %9 = vsyncpa [#allocation4], 0
    // Predicated region
    $region2: #{tpu_custom_call.1} parent=1 // pred_check
      _
    $region3: #{tpu_custom_call.1} parent=1 // pred_check_branch
      %11 = sbr.rel (0) target = $region5
    $region4: #{tpu_custom_call.1} parent=1 // pred_region
      %13 = vsyncadd [#allocation3], 0
      %s15 = sshll.u32 %s0, 4
      %s16 = int_to_ptr.hbm [resolvable:$true] %s15
      %s17 = sshll.u32 [#allocation2], 4
      %s18 = int_to_ptr.vmem [resolvable:$true] %s17
      %20 = dma.hbm_to_vmem [thread:$0]  %s16, 256, %s18, [#allocation3]
    $region5: #{tpu_custom_call.1} parent=1 // pred_fallthru
      _
    // Predicated region
    $region6: #{tpu_custom_call.1} parent=1 // pred_check
      _
    $region7: #{tpu_custom_call.1} parent=1 // pred_check_branch
      %22 = sbr.rel (0) target = $region9
    $region8: #{tpu_custom_call.1} parent=1 // pred_region
      %24 = vsyncadd [#allocation6], 0
      %s25 = sshll.u32 %s1, 4
      %s26 = int_to_ptr.hbm [resolvable:$true] %s25
      %s27 = sshll.u32 [#allocation5], 4
      %s28 = int_to_ptr.vmem [resolvable:$true] %s27
      %33 = dma.hbm_to_vmem [thread:$0]  %s26, 4096, %s28, [#allocation6], 128, 128, 8
    $region9: #{tpu_custom_call.1} parent=1 // pred_fallthru
      _
    // Predicated region
    $region10: #{tpu_custom_call.1} parent=1 // pred_check
      _
    $region11: #{tpu_custom_call.1} parent=1 // pred_check_branch
      %35 = sbr.rel (0) target = $region13
    $region12: #{tpu_custom_call.1} parent=1 // pred_region
      %37 = dma.done [#allocation3], 256
    $region13: #{tpu_custom_call.1} parent=1 // pred_fallthru
      _
    // Predicated region
    $region14: #{tpu_custom_call.1} parent=1 // pred_check
      _
    $region15: #{tpu_custom_call.1} parent=1 // pred_check_branch
      %39 = sbr.rel (0) target = $region17
    $region16: #{tpu_custom_call.1} parent=1 // pred_region
      %41 = dma.done [#allocation6], 4096
    $region17: #{tpu_custom_call.1} parent=1 // pred_fallthru
      _
    %v42 = vld [vmem:[#allocation2] sm:$0xff]
    %v43 = vld [vmem:[#allocation2 + $0x8] sm:$0xff]
    %v44 = vld [vmem:[#allocation5] sm:$0xff]
    %v45 = vld [vmem:[#allocation5 + $0x8] sm:$0xff]
    %v46 = vld [vmem:[#allocation5 + $0x10] sm:$0xff]
    %v47 = vld [vmem:[#allocation5 + $0x18] sm:$0xff]
    %v48 = vld [vmem:[#allocation5 + $0x20] sm:$0xff]
    %v49 = vld [vmem:[#allocation5 + $0x28] sm:$0xff]
    %v50 = vld [vmem:[#allocation5 + $0x30] sm:$0xff]
    %v51 = vld [vmem:[#allocation5 + $0x38] sm:$0xff]
    %v52 = vld [vmem:[#allocation5 + $0x40] sm:$0xff]
    %v53 = vld [vmem:[#allocation5 + $0x48] sm:$0xff]
    %v54 = vld [vmem:[#allocation5 + $0x50] sm:$0xff]
    %v55 = vld [vmem:[#allocation5 + $0x58] sm:$0xff]
    %v56 = vld [vmem:[#allocation5 + $0x60] sm:$0xff]
    %v57 = vld [vmem:[#allocation5 + $0x68] sm:$0xff]
    %v58 = vld [vmem:[#allocation5 + $0x70] sm:$0xff]
    %v59 = vld [vmem:[#allocation5 + $0x78] sm:$0xff]
    %v60 = vld [vmem:[#allocation5 + $0x80] sm:$0xff]
    %v61 = vld [vmem:[#allocation5 + $0x88] sm:$0xff]
    %v62 = vld [vmem:[#allocation5 + $0x90] sm:$0xff]
    %v63 = vld [vmem:[#allocation5 + $0x98] sm:$0xff]
    %v64 = vld [vmem:[#allocation5 + $0xa0] sm:$0xff]
    %v65 = vld [vmem:[#allocation5 + $0xa8] sm:$0xff]
    %v66 = vld [vmem:[#allocation5 + $0xb0] sm:$0xff]
    %v67 = vld [vmem:[#allocation5 + $0xb8] sm:$0xff]
    %v68 = vld [vmem:[#allocation5 + $0xc0] sm:$0xff]
    %v69 = vld [vmem:[#allocation5 + $0xc8] sm:$0xff]
    %v70 = vld [vmem:[#allocation5 + $0xd0] sm:$0xff]
    %v71 = vld [vmem:[#allocation5 + $0xd8] sm:$0xff]
    %v72 = vld [vmem:[#allocation5 + $0xe0] sm:$0xff]
    %v73 = vld [vmem:[#allocation5 + $0xe8] sm:$0xff]
    %v74 = vld [vmem:[#allocation5 + $0xf0] sm:$0xff]
    %v75 = vld [vmem:[#allocation5 + $0xf8] sm:$0xff]
    %76 = vmatpush.msra.mxu0 %v59
    %77 = vmatpush.msra.mxu0 %v58
    %78 = vmatpush.msra.mxu0 %v57
    %79 = vmatpush.msra.mxu0 %v56
    %80 = vmatpush.msra.mxu0 %v55
    %81 = vmatpush.msra.mxu0 %v54
    %82 = vmatpush.msra.mxu0 %v53
    %83 = vmatpush.msra.mxu0 %v52
    %84 = vmatpush.msra.mxu0 %v51
    %85 = vmatpush.msra.mxu0 %v50
    %86 = vmatpush.msra.mxu0 %v49
    %87 = vmatpush.msra.mxu0 %v48
    %88 = vmatpush.msra.mxu0 %v47
    %89 = vmatpush.msra.mxu0 %v46
    %90 = vmatpush.msra.mxu0 %v45
    %91 = vmatpush.msra.mxu0 %v44
    %92 = vmatmul.f32.gmra.mxu0 %v42
    %v93 = vpop.f32.mrf.mxu0
    %v94 = vadd.f32 0.0, %v93
    %95 = vdwg.mxu0
    %96 = vmatpush.msra.mxu0 %v75
    %97 = vmatpush.msra.mxu0 %v74
    %98 = vmatpush.msra.mxu0 %v73
    %99 = vmatpush.msra.mxu0 %v72
    %100 = vmatpush.msra.mxu0 %v71
    %101 = vmatpush.msra.mxu0 %v70
    %102 = vmatpush.msra.mxu0 %v69
    %103 = vmatpush.msra.mxu0 %v68
    %104 = vmatpush.msra.mxu0 %v67
    %105 = vmatpush.msra.mxu0 %v66
    %106 = vmatpush.msra.mxu0 %v65
    %107 = vmatpush.msra.mxu0 %v64
    %108 = vmatpush.msra.mxu0 %v63
    %109 = vmatpush.msra.mxu0 %v62
    %110 = vmatpush.msra.mxu0 %v61
    %111 = vmatpush.msra.mxu0 %v60
    %112 = vmatmul.f32.gmra.mxu0 %v43
    %v113 = vpop.f32.mrf.mxu0
    %v114 = vadd.f32 %v94, %v113
    %115 = vdwg.mxu0
    %116 = vst [vmem:[#allocation7] sm:$0xff] %v114
    // Predicated region
    $region18: #{tpu_custom_call.1} parent=1 // pred_check
      _
    $region19: #{tpu_custom_call.1} parent=1 // pred_check_branch
      %118 = sbr.rel (0) target = $region21
    $region20: #{tpu_custom_call.1} parent=1 // pred_region
      %120 = vsyncadd [#allocation4], 0
      %s122 = sshll.u32 [#allocation7], 4
      %s123 = int_to_ptr.vmem [resolvable:$true] %s122
      %s124 = sshll.u32 %s2, 4
      %s125 = int_to_ptr.hbm [resolvable:$true] %s124
      %127 = dma.vmem_to_hbm [thread:$0]  %s123, 128, %s125, [#allocation4]
    $region21: #{tpu_custom_call.1} parent=1 // pred_fallthru
      _
    // Predicated region
    $region22: #{tpu_custom_call.1} parent=1 // pred_check
      _
    $region23: #{tpu_custom_call.1} parent=1 // pred_check_branch
      %129 = sbr.rel (0) target = $region25
    $region24: #{tpu_custom_call.1} parent=1 // pred_region
      %131 = dma.done [#allocation4], 128
    $region25: #{tpu_custom_call.1} parent=1 // pred_fallthru
      _
    %132 = vsyncpa [#allocation3], 1
    %133 = vsyncpa [#allocation6], 1
    %134 = vsyncpa [#allocation4], 1

</llo_original>
